<compile_context>
chip_gen: v7x
topology: tpu7x:2x2x1
jax: 0.10.0
libtpu: 0.0.40
codegen_flags: <defaults>
</compile_context>

<pallas_src>
import functools

import jax
import jax.numpy as jnp
from jax.experimental import pallas as pl
from jax.experimental.pallas import tpu as pltpu


def _round_up(x, m):
    return (x + m - 1) // m * m


def attn_decoder_kernel(xh_ref, enc_ref, wattn_ref, wcomb_ref, wgru_ref,
                        wout_ref, bias_ref, out_ref, *, E, H, L, V, OUT_W):
    f32 = jnp.float32
    xh = xh_ref[...]                       # (1, E+H) = [embedded | hidden]
    emb = xh[:, :E]                        # (1, E)
    h = xh[:, E:]                          # (1, H)

    # Packed biases: row 0 = GRU gates, row 1 = [attn | combine | out].
    b_gru = bias_ref[0:1, 0:4 * H]         # [b_ir+b_hr | b_iz+b_hz | b_in | b_hn]
    b_attn = bias_ref[1:2, 0:L]
    b_comb = bias_ref[1:2, L:L + H]
    b_out = bias_ref[1:2, L + H:L + H + V]

    # attn_weights = softmax(Linear_attn(cat(embedded, hidden))) -- one matmul.
    attn_logits = jnp.dot(xh, wattn_ref[...], preferred_element_type=f32) + b_attn
    m = jnp.max(attn_logits, axis=1, keepdims=True)
    e = jnp.exp(attn_logits - m)
    aw = e / jnp.sum(e, axis=1, keepdims=True)                          # (1, L)

    # attn_applied = attn_weights @ encoder_outputs
    attn_applied = jnp.dot(aw, enc_ref[...], preferred_element_type=f32)  # (1, H)

    # x = relu(Linear_attn_combine(cat(embedded, attn_applied))) -- one matmul.
    xc = jnp.concatenate([emb, attn_applied], axis=1)                   # (1, E+H)
    x = jnp.maximum(
        jnp.dot(xc, wcomb_ref[...], preferred_element_type=f32) + b_comb, 0.0)

    # Single-step GRU cell fused into one (1, 2H) @ (2H, 4H) matmul.
    #   g = [x@W_ir + h@W_hr | x@W_iz + h@W_hz | x@W_in | h@W_hn] + b_gru
    xhg = jnp.concatenate([x, h], axis=1)                               # (1, 2H)
    g = jnp.dot(xhg, wgru_ref[...], preferred_element_type=f32) + b_gru  # (1, 4H)
    r = jax.nn.sigmoid(g[:, 0:H])
    z = jax.nn.sigmoid(g[:, H:2 * H])
    n = jnp.tanh(g[:, 2 * H:3 * H] + r * g[:, 3 * H:4 * H])
    h_new = (1.0 - z) * n + z * h

    # log_softmax(Linear_out(h_new))
    logits = jnp.dot(h_new, wout_ref[...], preferred_element_type=f32) + b_out
    lm = jnp.max(logits, axis=1, keepdims=True)
    lse = lm + jnp.log(jnp.sum(jnp.exp(logits - lm), axis=1, keepdims=True))
    log_probs = logits - lse

    # One lane-dense packed store: [log_probs | h_new | attn_weights | pad].
    pieces = [log_probs, h_new, aw]
    pad = OUT_W - (V + H + L)
    if pad > 0:
        pieces.append(jnp.zeros((1, pad), f32))
    out_ref[...] = jnp.concatenate(pieces, axis=1)


def pack_params(p):
    """Fuse raw (in, out)-layout parameters into the kernel's packed slabs."""
    E, L = p["w_attn_e"].shape
    H = p["w_comb_h"].shape[0]
    V = p["w_out"].shape[1]

    w_attn = jnp.concatenate([p["w_attn_e"], p["w_attn_h"]], axis=0)    # (E+H, L)
    w_comb = jnp.concatenate([p["w_comb_e"], p["w_comb_h"]], axis=0)    # (E+H, H)

    zeros_hh = jnp.zeros((H, H), jnp.float32)
    w_gru_x = jnp.concatenate([p["w_ir"], p["w_iz"], p["w_in"], zeros_hh], axis=1)
    w_gru_h = jnp.concatenate([p["w_hr"], p["w_hz"], zeros_hh, p["w_hn"]], axis=1)
    w_gru = jnp.concatenate([w_gru_x, w_gru_h], axis=0)                 # (2H, 4H)

    bw = max(4 * H, L + H + V)
    row0 = jnp.concatenate([p["b_ir"] + p["b_hr"], p["b_iz"] + p["b_hz"],
                            p["b_in"], p["b_hn"]], axis=1)
    row0 = jnp.pad(row0, ((0, 0), (0, bw - 4 * H)))
    row1 = jnp.concatenate([p["b_attn"], p["b_comb"], p["b_out"]], axis=1)
    row1 = jnp.pad(row1, ((0, 0), (0, bw - (L + H + V))))
    biases = jnp.concatenate([row0, row1], axis=0)                      # (2, bw)

    return {"embedding": p["embedding"], "w_attn": w_attn, "w_comb": w_comb,
            "w_gru": w_gru, "w_out": p["w_out"], "biases": biases}


def attn_decoder_forward(token, hidden, encoder_outputs, pk):
    V, E = pk["embedding"].shape
    H = hidden.shape[-1]
    L = encoder_outputs.shape[0]
    V = pk["w_out"].shape[1]
    OUT_W = _round_up(V + H + L, 128)

    # Glue: embedding row gather + .view(1, -1); nn.Dropout(0.1) is identity
    # in eval mode.
    # TODO(synk): training-mode dropout would use pltpu.prng_seed /
    # pltpu.prng_random_bits in-kernel.
    embedded = pk["embedding"][token].reshape(1, E).astype(jnp.float32)
    h0 = hidden.reshape(1, H).astype(jnp.float32)
    xh = jnp.concatenate([embedded, h0], axis=1)                        # (1, E+H)

    vmem = pl.BlockSpec(memory_space=pltpu.MemorySpace.VMEM)
    kernel = functools.partial(attn_decoder_kernel, E=E, H=H, L=L, V=V, OUT_W=OUT_W)

    packed_out = pl.pallas_call(
        kernel,
        out_shape=jax.ShapeDtypeStruct((1, OUT_W), jnp.float32),
        in_specs=[vmem] * 7,
        out_specs=vmem,
    )(xh, encoder_outputs, pk["w_attn"], pk["w_comb"], pk["w_gru"],
      pk["w_out"], pk["biases"])

    log_probs = packed_out[:, :V]
    h_new = packed_out[:, V:V + H]
    attn_weights = packed_out[:, V + H:V + H + L]
    return log_probs, h_new.reshape(1, 1, H), attn_weights


def reference_forward(token, hidden, enc, p):
    emb = p["embedding"][token].reshape(1, -1)
    h = hidden.reshape(1, -1)
    aw = jax.nn.softmax(emb @ p["w_attn_e"] + h @ p["w_attn_h"] + p["b_attn"], axis=1)
    applied = aw @ enc
    x = jnp.maximum(emb @ p["w_comb_e"] + applied @ p["w_comb_h"] + p["b_comb"], 0.0)
    r = jax.nn.sigmoid(x @ p["w_ir"] + p["b_ir"] + h @ p["w_hr"] + p["b_hr"])
    z = jax.nn.sigmoid(x @ p["w_iz"] + p["b_iz"] + h @ p["w_hz"] + p["b_hz"])
    n = jnp.tanh(x @ p["w_in"] + p["b_in"] + r * (h @ p["w_hn"] + p["b_hn"]))
    h_new = (1.0 - z) * n + z * h
    logits = h_new @ p["w_out"] + p["b_out"]
    return jax.nn.log_softmax(logits, axis=1), h_new.reshape(1, 1, -1), aw


def init_params(key, input_size, hidden_size, word_num, max_length):
    """Deterministic synthetic parameters (PyTorch-like uniform init), stored
    as (in_features, out_features)."""
    def uni(k, shape, fan_in):
        bound = 1.0 / jnp.sqrt(jnp.float32(fan_in))
        return jax.random.uniform(k, shape, jnp.float32, -bound, bound)

    ks = jax.random.split(key, 24)
    E, H, V, L = input_size, hidden_size, word_num, max_length
    p = {}
    p["embedding"] = jax.random.normal(ks[0], (V, E), jnp.float32)
    # attn: Linear(H + E, L); split into embedded-part and hidden-part
    p["w_attn_e"] = uni(ks[1], (E, L), E + H)
    p["w_attn_h"] = uni(ks[2], (H, L), E + H)
    p["b_attn"] = uni(ks[3], (1, L), E + H)
    # attn_combine: Linear(H + E, H)
    p["w_comb_e"] = uni(ks[4], (E, H), E + H)
    p["w_comb_h"] = uni(ks[5], (H, H), E + H)
    p["b_comb"] = uni(ks[6], (1, H), E + H)
    # GRU(H, H), gates in PyTorch order (r, z, n), pre-split
    p["w_ir"] = uni(ks[7], (H, H), H); p["w_iz"] = uni(ks[8], (H, H), H)
    p["w_in"] = uni(ks[9], (H, H), H)
    p["w_hr"] = uni(ks[10], (H, H), H); p["w_hz"] = uni(ks[11], (H, H), H)
    p["w_hn"] = uni(ks[12], (H, H), H)
    p["b_ir"] = uni(ks[13], (1, H), H); p["b_iz"] = uni(ks[14], (1, H), H)
    p["b_in"] = uni(ks[15], (1, H), H)
    p["b_hr"] = uni(ks[16], (1, H), H); p["b_hz"] = uni(ks[17], (1, H), H)
    p["b_hn"] = uni(ks[18], (1, H), H)
    # out: Linear(H, V)
    p["w_out"] = uni(ks[19], (H, V), H)
    p["b_out"] = uni(ks[20], (1, V), H)
    return p


if __name__ == "__main__":
    INPUT_SIZE = 32      # embedding dim
    HIDDEN_SIZE = 32
    WORD_NUM = 64        # vocab / output size
    MAX_LENGTH = 16

    key = jax.random.PRNGKey(0)
    pkey, hkey, ekey = jax.random.split(key, 3)

    params = init_params(pkey, INPUT_SIZE, HIDDEN_SIZE, WORD_NUM, MAX_LENGTH)
    packed = pack_params(params)

    token = jnp.array([[3]], dtype=jnp.int32)                                 # input
    hidden = jax.random.normal(hkey, (1, 1, HIDDEN_SIZE), jnp.float32)        # hidden
    encoder_outputs = jax.random.normal(ekey, (MAX_LENGTH, HIDDEN_SIZE),
                                        jnp.float32)                          # encoder_outputs

    log_probs, h_new, attn_weights = attn_decoder_forward(
        token, hidden, encoder_outputs, packed)
    jax.block_until_ready((log_probs, h_new, attn_weights))

    ref_lp, ref_h, ref_aw = reference_forward(token, hidden, encoder_outputs, params)
    assert log_probs.shape == (1, WORD_NUM)
    assert h_new.shape == (1, 1, HIDDEN_SIZE)
    assert attn_weights.shape == (1, MAX_LENGTH)
    assert jnp.allclose(log_probs, ref_lp, atol=1e-4, rtol=1e-4)
    assert jnp.allclose(h_new, ref_h, atol=1e-4, rtol=1e-4)
    assert jnp.allclose(attn_weights, ref_aw, atol=1e-4, rtol=1e-4)

    print("KERNEL_OK")
</pallas_src>

<mosaic_0001>
module attributes {stable_mosaic.version = 11 : i64} {
  func.func @attn_decoder_kernel(%arg0: memref<1x64xf32, #tpu.memory_space<vmem>>, %arg1: memref<16x32xf32, #tpu.memory_space<vmem>>, %arg2: memref<64x16xf32, #tpu.memory_space<vmem>>, %arg3: memref<64x32xf32, #tpu.memory_space<vmem>>, %arg4: memref<64x128xf32, #tpu.memory_space<vmem>>, %arg5: memref<32x64xf32, #tpu.memory_space<vmem>>, %arg6: memref<2x128xf32, #tpu.memory_space<vmem>>, %arg7: memref<1x128xf32, #tpu.memory_space<vmem>>) attributes {dimension_semantics = [], scalar_prefetch = 0 : i64, scratch_operands = 0 : i64, tpu.core_type = #tpu.core_type<tc>} {
    %c0 = arith.constant 0 : index
    %c0_0 = arith.constant 0 : index
    %0 = vector.load %arg0[%c0, %c0_0] : memref<1x64xf32, #tpu.memory_space<vmem>>, vector<1x64xf32>
    %1 = vector.extract_strided_slice %0 {offsets = [0, 0], sizes = [1, 32], strides = [1, 1]} : vector<1x64xf32> to vector<1x32xf32>
    %2 = vector.extract_strided_slice %0 {offsets = [0, 32], sizes = [1, 32], strides = [1, 1]} : vector<1x64xf32> to vector<1x32xf32>
    %c0_1 = arith.constant 0 : index
    %c0_2 = arith.constant 0 : index
    %3 = vector.load %arg6[%c0_1, %c0_2] : memref<2x128xf32, #tpu.memory_space<vmem>>, vector<1x128xf32>
    %c1 = arith.constant 1 : index
    %c0_3 = arith.constant 0 : index
    %4 = vector.load %arg6[%c1, %c0_3] : memref<2x128xf32, #tpu.memory_space<vmem>>, vector<1x16xf32>
    %c1_4 = arith.constant 1 : index
    %c16 = arith.constant 16 : index
    %5 = vector.load %arg6[%c1_4, %c16] : memref<2x128xf32, #tpu.memory_space<vmem>>, vector<1x32xf32>
    %c1_5 = arith.constant 1 : index
    %c48 = arith.constant 48 : index
    %6 = vector.load %arg6[%c1_5, %c48] : memref<2x128xf32, #tpu.memory_space<vmem>>, vector<1x64xf32>
    %c0_6 = arith.constant 0 : index
    %c0_7 = arith.constant 0 : index
    %7 = vector.load %arg2[%c0_6, %c0_7] : memref<64x16xf32, #tpu.memory_space<vmem>>, vector<64x16xf32>
    %cst = arith.constant dense<0.000000e+00> : vector<1x16xf32>
    %8 = tpu.matmul %0, %7, %cst {dimension_numbers = #tpu.dot_dimension_numbers<[1], [0], [0], [1], [0, 0, 1, 1], [], []>} : vector<1x64xf32>, vector<64x16xf32>, vector<1x16xf32> -> vector<1x16xf32>
    %9 = arith.addf %8, %4 : vector<1x16xf32>
    %cst_8 = arith.constant dense<0xFF800000> : vector<1xf32>
    %10 = vector.multi_reduction <maximumf>, %9, %cst_8 [1] : vector<1x16xf32> to vector<1xf32>
    %11 = vector.shape_cast %10 : vector<1xf32> to vector<1x1xf32>
    %12 = vector.broadcast %11 : vector<1x1xf32> to vector<1x16xf32>
    %13 = arith.subf %9, %12 : vector<1x16xf32>
    %14 = math.exp %13 : vector<1x16xf32>
    %cst_9 = arith.constant dense<0.000000e+00> : vector<1xf32>
    %15 = vector.multi_reduction <add>, %14, %cst_9 [1] : vector<1x16xf32> to vector<1xf32>
    %16 = vector.shape_cast %15 : vector<1xf32> to vector<1x1xf32>
    %17 = vector.broadcast %16 : vector<1x1xf32> to vector<1x16xf32>
    %18 = arith.divf %14, %17 : vector<1x16xf32>
    %c0_10 = arith.constant 0 : index
    %c0_11 = arith.constant 0 : index
    %19 = vector.load %arg1[%c0_10, %c0_11] : memref<16x32xf32, #tpu.memory_space<vmem>>, vector<16x32xf32>
    %cst_12 = arith.constant dense<0.000000e+00> : vector<1x32xf32>
    %20 = tpu.matmul %18, %19, %cst_12 {dimension_numbers = #tpu.dot_dimension_numbers<[1], [0], [0], [1], [0, 0, 1, 1], [], []>} : vector<1x16xf32>, vector<16x32xf32>, vector<1x32xf32> -> vector<1x32xf32>
    %21 = tpu.concatenate %1, %20 in 1 : vector<1x32xf32>, vector<1x32xf32> -> vector<1x64xf32>
    %c0_13 = arith.constant 0 : index
    %c0_14 = arith.constant 0 : index
    %22 = vector.load %arg3[%c0_13, %c0_14] : memref<64x32xf32, #tpu.memory_space<vmem>>, vector<64x32xf32>
    %cst_15 = arith.constant dense<0.000000e+00> : vector<1x32xf32>
    %23 = tpu.matmul %21, %22, %cst_15 {dimension_numbers = #tpu.dot_dimension_numbers<[1], [0], [0], [1], [0, 0, 1, 1], [], []>} : vector<1x64xf32>, vector<64x32xf32>, vector<1x32xf32> -> vector<1x32xf32>
    %24 = arith.addf %23, %5 : vector<1x32xf32>
    %cst_16 = arith.constant 0.000000e+00 : f32
    %25 = vector.broadcast %cst_16 : f32 to vector<1x32xf32>
    %26 = arith.maximumf %24, %25 : vector<1x32xf32>
    %27 = tpu.concatenate %26, %2 in 1 : vector<1x32xf32>, vector<1x32xf32> -> vector<1x64xf32>
    %c0_17 = arith.constant 0 : index
    %c0_18 = arith.constant 0 : index
    %28 = vector.load %arg4[%c0_17, %c0_18] : memref<64x128xf32, #tpu.memory_space<vmem>>, vector<64x128xf32>
    %cst_19 = arith.constant dense<0.000000e+00> : vector<1x128xf32>
    %29 = tpu.matmul %27, %28, %cst_19 {dimension_numbers = #tpu.dot_dimension_numbers<[1], [0], [0], [1], [0, 0, 1, 1], [], []>} : vector<1x64xf32>, vector<64x128xf32>, vector<1x128xf32> -> vector<1x128xf32>
    %30 = arith.addf %29, %3 : vector<1x128xf32>
    %31 = vector.extract_strided_slice %30 {offsets = [0, 0], sizes = [1, 32], strides = [1, 1]} : vector<1x128xf32> to vector<1x32xf32>
    %32 = arith.negf %31 : vector<1x32xf32>
    %33 = math.exp %32 : vector<1x32xf32>
    %cst_20 = arith.constant 1.000000e+00 : f32
    %34 = vector.broadcast %cst_20 : f32 to vector<1x32xf32>
    %35 = arith.addf %34, %33 : vector<1x32xf32>
    %36 = arith.divf %34, %35 : vector<1x32xf32>
    %37 = vector.extract_strided_slice %30 {offsets = [0, 32], sizes = [1, 32], strides = [1, 1]} : vector<1x128xf32> to vector<1x32xf32>
    %38 = arith.negf %37 : vector<1x32xf32>
    %39 = math.exp %38 : vector<1x32xf32>
    %cst_21 = arith.constant 1.000000e+00 : f32
    %40 = vector.broadcast %cst_21 : f32 to vector<1x32xf32>
    %41 = arith.addf %40, %39 : vector<1x32xf32>
    %42 = arith.divf %40, %41 : vector<1x32xf32>
    %43 = vector.extract_strided_slice %30 {offsets = [0, 64], sizes = [1, 32], strides = [1, 1]} : vector<1x128xf32> to vector<1x32xf32>
    %44 = vector.extract_strided_slice %30 {offsets = [0, 96], sizes = [1, 32], strides = [1, 1]} : vector<1x128xf32> to vector<1x32xf32>
    %45 = arith.mulf %36, %44 : vector<1x32xf32>
    %46 = arith.addf %43, %45 : vector<1x32xf32>
    %47 = math.tanh %46 : vector<1x32xf32>
    %cst_22 = arith.constant 1.000000e+00 : f32
    %48 = vector.broadcast %cst_22 : f32 to vector<1x32xf32>
    %49 = arith.subf %48, %42 : vector<1x32xf32>
    %50 = arith.mulf %49, %47 : vector<1x32xf32>
    %51 = arith.mulf %42, %2 : vector<1x32xf32>
    %52 = arith.addf %50, %51 : vector<1x32xf32>
    %c0_23 = arith.constant 0 : index
    %c0_24 = arith.constant 0 : index
    %53 = vector.load %arg5[%c0_23, %c0_24] : memref<32x64xf32, #tpu.memory_space<vmem>>, vector<32x64xf32>
    %cst_25 = arith.constant dense<0.000000e+00> : vector<1x64xf32>
    %54 = tpu.matmul %52, %53, %cst_25 {dimension_numbers = #tpu.dot_dimension_numbers<[1], [0], [0], [1], [0, 0, 1, 1], [], []>} : vector<1x32xf32>, vector<32x64xf32>, vector<1x64xf32> -> vector<1x64xf32>
    %55 = arith.addf %54, %6 : vector<1x64xf32>
    %cst_26 = arith.constant dense<0xFF800000> : vector<1xf32>
    %56 = vector.multi_reduction <maximumf>, %55, %cst_26 [1] : vector<1x64xf32> to vector<1xf32>
    %57 = vector.shape_cast %56 : vector<1xf32> to vector<1x1xf32>
    %58 = vector.broadcast %57 : vector<1x1xf32> to vector<1x64xf32>
    %59 = arith.subf %55, %58 : vector<1x64xf32>
    %60 = math.exp %59 : vector<1x64xf32>
    %cst_27 = arith.constant dense<0.000000e+00> : vector<1xf32>
    %61 = vector.multi_reduction <add>, %60, %cst_27 [1] : vector<1x64xf32> to vector<1xf32>
    %62 = vector.shape_cast %61 : vector<1xf32> to vector<1x1xf32>
    %63 = math.log %62 : vector<1x1xf32>
    %64 = arith.addf %57, %63 : vector<1x1xf32>
    %65 = vector.broadcast %64 : vector<1x1xf32> to vector<1x64xf32>
    %66 = arith.subf %55, %65 : vector<1x64xf32>
    %cst_28 = arith.constant 0.000000e+00 : f32
    %67 = vector.broadcast %cst_28 : f32 to vector<1x16xf32>
    %68 = tpu.concatenate %66, %52, %18, %67 in 1 : vector<1x64xf32>, vector<1x32xf32>, vector<1x16xf32>, vector<1x16xf32> -> vector<1x128xf32>
    %c0_29 = arith.constant 0 : index
    %c0_30 = arith.constant 0 : index
    %69 = vector.load %arg7[%c0_29, %c0_30] : memref<1x128xf32, #tpu.memory_space<vmem>>, vector<1x128xf32>
    tpu.vector_store %arg7[%c0_29, %c0_30], %68 {strides = array<i32>} : memref<1x128xf32, #tpu.memory_space<vmem>>, vector<1x128xf32>,
    return
  }
}

</mosaic_0001>

<llo_original>
// kernel: tpu_custom_call.1
$region0: #{tpu_custom_call.1}
  #allocation0 [shape = 'u32[]', space=smem, size = 0x4, offset = 0x4, fixed_abs, tag = 'smem constant byte address 0x4 - core index']
  #allocation1 [shape = 'u32[144,128]{1,0:T(1,128)}', space=vmem, size = 0x12000, scoped, tag = 'internal scratch']
  %s0 = inlined_call_operand.vmem [shape: f32[1,64], index: 0, kind: input, shape index: {}]
  %s1 = inlined_call_operand.vmem [shape: f32[16,32], index: 1, kind: input, shape index: {}]
  %s2 = inlined_call_operand.vmem [shape: f32[64,16], index: 2, kind: input, shape index: {}]
  %s3 = inlined_call_operand.vmem [shape: f32[64,32], index: 3, kind: input, shape index: {}]
  %s4 = inlined_call_operand.vmem [shape: f32[64,128], index: 4, kind: input, shape index: {}]
  %s5 = inlined_call_operand.vmem [shape: f32[32,64], index: 5, kind: input, shape index: {}]
  %s6 = inlined_call_operand.vmem [shape: f32[2,128], index: 6, kind: input, shape index: {}]
  %s7 = inlined_call_operand.hbm [shape: f32[1,128], index: 7, kind: output, shape index: {}]
  %s8 = sld [smem:[#allocation0]]
  $region38: #{tpu_custom_call.1} parent=0
    _
  %s10 = ssub.s32 1, %s8
  %s11 = scalar_select 0, %s10, %s8
  $region1: #{tpu_custom_call.1} parent=0
    #allocation2 [shape = 'u8[512]{0}', space=vmem, size = 0x400, scoped, tag = 'output window, operand 0, single buffered']
    #allocation3 [shape = 's32[1]{0}', space=sflag, size = 0x4, scoped, tag = 'scoped memory for tpu_custom_call.1']
    %12 = vsyncpa [#allocation3], 0
    // Predicated region
    $region2: #{tpu_custom_call.1} parent=1 // pred_check
      _
    $region3: #{tpu_custom_call.1} parent=1 // pred_check_branch
      %14 = sbr.rel (0) target = $region5
    $region4: #{tpu_custom_call.1} parent=1 // pred_region
      _
    $region5: #{tpu_custom_call.1} parent=1 // pred_fallthru
      _
    // Predicated region
    $region6: #{tpu_custom_call.1} parent=1 // pred_check
      _
    $region7: #{tpu_custom_call.1} parent=1 // pred_check_branch
      %16 = sbr.rel (0) target = $region9
    $region8: #{tpu_custom_call.1} parent=1 // pred_region
      _
    $region9: #{tpu_custom_call.1} parent=1 // pred_fallthru
      _
    // Predicated region
    $region10: #{tpu_custom_call.1} parent=1 // pred_check
      _
    $region11: #{tpu_custom_call.1} parent=1 // pred_check_branch
      %18 = sbr.rel (0) target = $region13
    $region12: #{tpu_custom_call.1} parent=1 // pred_region
      _
    $region13: #{tpu_custom_call.1} parent=1 // pred_fallthru
      _
    // Predicated region
    $region14: #{tpu_custom_call.1} parent=1 // pred_check
      _
    $region15: #{tpu_custom_call.1} parent=1 // pred_check_branch
      %20 = sbr.rel (0) target = $region17
    $region16: #{tpu_custom_call.1} parent=1 // pred_region
      _
    $region17: #{tpu_custom_call.1} parent=1 // pred_fallthru
      _
    // Predicated region
    $region18: #{tpu_custom_call.1} parent=1 // pred_check
      _
    $region19: #{tpu_custom_call.1} parent=1 // pred_check_branch
      %22 = sbr.rel (0) target = $region21
    $region20: #{tpu_custom_call.1} parent=1 // pred_region
      _
    $region21: #{tpu_custom_call.1} parent=1 // pred_fallthru
      _
    // Predicated region
    $region22: #{tpu_custom_call.1} parent=1 // pred_check
      _
    $region23: #{tpu_custom_call.1} parent=1 // pred_check_branch
      %24 = sbr.rel (0) target = $region25
    $region24: #{tpu_custom_call.1} parent=1 // pred_region
      _
    $region25: #{tpu_custom_call.1} parent=1 // pred_fallthru
      _
    // Predicated region
    $region26: #{tpu_custom_call.1} parent=1 // pred_check
      _
    $region27: #{tpu_custom_call.1} parent=1 // pred_check_branch
      %26 = sbr.rel (0) target = $region29
    $region28: #{tpu_custom_call.1} parent=1 // pred_region
      _
    $region29: #{tpu_custom_call.1} parent=1 // pred_fallthru
      _
    %v27 = vld [vmem:[%s0] sm:$0x1]
    %v28 = vld [vmem:[%s6] sm:$0x1]
    %v29 = vld [vmem:[%s6 + $0x1] sm:$0x1]
    %v30 = vld [vmem:[%s2] sm:$0xff]
    %v31 = vld [vmem:[%s2 + $0x8] sm:$0xff]
    %v32 = vld [vmem:[%s2 + $0x10] sm:$0xff]
    %v33 = vld [vmem:[%s2 + $0x18] sm:$0xff]
    %v34 = vld [vmem:[%s2 + $0x20] sm:$0xff]
    %v35 = vld [vmem:[%s2 + $0x28] sm:$0xff]
    %v36 = vld [vmem:[%s2 + $0x30] sm:$0xff]
    %v37 = vld [vmem:[%s2 + $0x38] sm:$0xff]
    %vm38 = vcmask 523264
    %v40 = vsel %vm38, %v27, 0
    %42 = vmatprep.subr.mxu0 0.0
    %43 = vmatpush1.msra.mxu0 %v30
    %44 = vmatprep.subr.mxu0 0.0
    %45 = vmatpush1.msra.mxu0 %v31
    %46 = vmatprep.subr.mxu0 0.0
    %47 = vmatpush1.msra.mxu0 %v32
    %48 = vmatprep.subr.mxu0 0.0
    %49 = vmatpush1.msra.mxu0 %v33
    %50 = vmatprep.subr.mxu0 0.0
    %51 = vmatpush1.msra.mxu0 %v34
    %52 = vmatprep.subr.mxu0 0.0
    %53 = vmatpush1.msra.mxu0 %v35
    %54 = vmatprep.subr.mxu0 0.0
    %55 = vmatpush1.msra.mxu0 %v36
    %56 = vmatprep.subr.mxu0 0.0
    %57 = vmatpush1.msra.mxu0 %v37
    %58 = vmatprep.subr.mxu0 0.0
    %59 = vmatpush1.msra.mxu0 0.0
    %60 = vmatprep.subr.mxu0 0.0
    %61 = vmatpush1.msra.mxu0 0.0
    %62 = vmatprep.subr.mxu0 0.0
    %63 = vmatpush1.msra.mxu0 0.0
    %64 = vmatprep.subr.mxu0 0.0
    %65 = vmatpush1.msra.mxu0 0.0
    %66 = vmatprep.subr.mxu0 0.0
    %67 = vmatpush1.msra.mxu0 0.0
    %68 = vmatprep.subr.mxu0 0.0
    %69 = vmatpush1.msra.mxu0 0.0
    %70 = vmatprep.subr.mxu0 0.0
    %71 = vmatpush1.msra.mxu0 0.0
    %72 = vmatprep.subr.mxu0 0.0
    %73 = vmatpush1.msra.mxu0 0.0
    %74 = vmatprep.subr.mxu0 0.0
    %75 = vmatpush1.msra.mxu0 0.0
    %76 = vmatprep.subr.mxu0 0.0
    %77 = vmatpush1.msra.mxu0 0.0
    %78 = vmatprep.subr.mxu0 0.0
    %79 = vmatpush1.msra.mxu0 0.0
    %80 = vmatprep.subr.mxu0 0.0
    %81 = vmatpush1.msra.mxu0 0.0
    %82 = vmatprep.subr.mxu0 0.0
    %83 = vmatpush1.msra.mxu0 0.0
    %84 = vmatprep.subr.mxu0 0.0
    %85 = vmatpush1.msra.mxu0 0.0
    %86 = vmatprep.subr.mxu0 0.0
    %87 = vmatpush1.msra.mxu0 0.0
    %88 = vmatprep.subr.mxu0 0.0
    %89 = vmatpush1.msra.mxu0 0.0
    %90 = vmatprep.subr.mxu0 0.0
    %91 = vmatpush1.msra.mxu0 0.0
    %92 = vmatprep.subr.mxu0 0.0
    %93 = vmatpush1.msra.mxu0 0.0
    %94 = vmatprep.subr.mxu0 0.0
    %95 = vmatpush1.msra.mxu0 0.0
    %96 = vmatprep.subr.mxu0 0.0
    %97 = vmatpush1.msra.mxu0 0.0
    %98 = vmatprep.subr.mxu0 0.0
    %99 = vmatpush1.msra.mxu0 0.0
    %100 = vmatprep.subr.mxu0 0.0
    %101 = vmatpush1.msra.mxu0 0.0
    %102 = vmatprep.subr.mxu0 0.0
    %103 = vmatpush1.msra.mxu0 0.0
    %104 = vmatprep.subr.mxu0 0.0
    %105 = vmatpush1.msra.mxu0 0.0
    %106 = vmatprep.mubr.f32.mxu0 0.0
    %107 = vmatmul.mubr.f32.gmra.mrb[0].mxu0 %v40
    %v108 = vpop.f32.mrb[0].mxu0
    %v109 = vadd.f32 %v29, %v108
    %v110 = vpop.f32.mrb[0].mxu0
    %111 = vdwg.mxu0
    %vm112 = vcmask 122880
    %v113 = vsel %vm112, %v109, -inf
    %114 = vmax.xlane.f32.xlu0 %v113
    %v115 = vpop.xlane.xlu0 %114
    %v116 = vsub.f32 %v109, %v115
    %v117 = vmul.f32 %v116, 1.442695
    %v118 = vpow.pop %v117
    %v119 = vsel %vm112, %v118, 0.0
    %120 = vadd.xlane.f32.xlu0 %v119
    %v121 = vpop.xlane.xlu0 %120
    %v122 = vrcp.pop %v121
    %v123 = vmul.f32 %v118, %v122
    %v124 = vld [vmem:[%s1] sm:$0xff]
    %v125 = vld [vmem:[%s1 + $0x8] sm:$0xff]
    %vm126 = vcmask 130048
    %v128 = vsel %vm126, %v123, 0
    %130 = vmatprep.subr.mxu0 0.0
    %131 = vmatpush1.msra.mxu0 %v124
    %132 = vmatprep.subr.mxu0 0.0
    %133 = vmatpush1.msra.mxu0 %v125
    %134 = vmatprep.subr.mxu0 0.0
    %135 = vmatpush1.msra.mxu0 0.0
    %136 = vmatprep.subr.mxu0 0.0
    %137 = vmatpush1.msra.mxu0 0.0
    %138 = vmatprep.subr.mxu0 0.0
    %139 = vmatpush1.msra.mxu0 0.0
    %140 = vmatprep.subr.mxu0 0.0
    %141 = vmatpush1.msra.mxu0 0.0
    %142 = vmatprep.subr.mxu0 0.0
    %143 = vmatpush1.msra.mxu0 0.0
    %144 = vmatprep.subr.mxu0 0.0
    %145 = vmatpush1.msra.mxu0 0.0
    %146 = vmatprep.subr.mxu0 0.0
    %147 = vmatpush1.msra.mxu0 0.0
    %148 = vmatprep.subr.mxu0 0.0
    %149 = vmatpush1.msra.mxu0 0.0
    %150 = vmatprep.subr.mxu0 0.0
    %151 = vmatpush1.msra.mxu0 0.0
    %152 = vmatprep.subr.mxu0 0.0
    %153 = vmatpush1.msra.mxu0 0.0
    %154 = vmatprep.subr.mxu0 0.0
    %155 = vmatpush1.msra.mxu0 0.0
    %156 = vmatprep.subr.mxu0 0.0
    %157 = vmatpush1.msra.mxu0 0.0
    %158 = vmatprep.subr.mxu0 0.0
    %159 = vmatpush1.msra.mxu0 0.0
    %160 = vmatprep.subr.mxu0 0.0
    %161 = vmatpush1.msra.mxu0 0.0
    %162 = vmatprep.subr.mxu0 0.0
    %163 = vmatpush1.msra.mxu0 0.0
    %164 = vmatprep.subr.mxu0 0.0
    %165 = vmatpush1.msra.mxu0 0.0
    %166 = vmatprep.subr.mxu0 0.0
    %167 = vmatpush1.msra.mxu0 0.0
    %168 = vmatprep.subr.mxu0 0.0
    %169 = vmatpush1.msra.mxu0 0.0
    %170 = vmatprep.subr.mxu0 0.0
    %171 = vmatpush1.msra.mxu0 0.0
    %172 = vmatprep.subr.mxu0 0.0
    %173 = vmatpush1.msra.mxu0 0.0
    %174 = vmatprep.subr.mxu0 0.0
    %175 = vmatpush1.msra.mxu0 0.0
    %176 = vmatprep.subr.mxu0 0.0
    %177 = vmatpush1.msra.mxu0 0.0
    %178 = vmatprep.subr.mxu0 0.0
    %179 = vmatpush1.msra.mxu0 0.0
    %180 = vmatprep.subr.mxu0 0.0
    %181 = vmatpush1.msra.mxu0 0.0
    %182 = vmatprep.subr.mxu0 0.0
    %183 = vmatpush1.msra.mxu0 0.0
    %184 = vmatprep.subr.mxu0 0.0
    %185 = vmatpush1.msra.mxu0 0.0
    %186 = vmatprep.subr.mxu0 0.0
    %187 = vmatpush1.msra.mxu0 0.0
    %188 = vmatprep.subr.mxu0 0.0
    %189 = vmatpush1.msra.mxu0 0.0
    %190 = vmatprep.subr.mxu0 0.0
    %191 = vmatpush1.msra.mxu0 0.0
    %192 = vmatprep.subr.mxu0 0.0
    %193 = vmatpush1.msra.mxu0 0.0
    %194 = vmatprep.mubr.f32.mxu0 0.0
    %195 = vmatmul.mubr.f32.gmra.mrb[0].mxu0 %v128
    %v196 = vpop.f32.mrb[0].mxu0
    %v197 = vadd.f32 0.0, %v196
    %v198 = vpop.f32.mrb[0].mxu0
    %199 = vdwg.mxu0
    %201 = vrot.lane.b32.xlu0 %v197, 32
    %v202 = vpop.permute.xlu0 %201
    %vm204 = vcmask 261120
    %v205 = vsel %vm204, %v27, %v202
    %v206 = vld [vmem:[%s3] sm:$0xff]
    %v207 = vld [vmem:[%s3 + $0x8] sm:$0xff]
    %v208 = vld [vmem:[%s3 + $0x10] sm:$0xff]
    %v209 = vld [vmem:[%s3 + $0x18] sm:$0xff]
    %v210 = vld [vmem:[%s3 + $0x20] sm:$0xff]
    %v211 = vld [vmem:[%s3 + $0x28] sm:$0xff]
    %v212 = vld [vmem:[%s3 + $0x30] sm:$0xff]
    %v213 = vld [vmem:[%s3 + $0x38] sm:$0xff]
    %215 = vrot.lane.b32.xlu0 %v29, 112
    %v216 = vpop.permute.xlu0 %215
    %v219 = vsel %vm38, %v205, 0
    %221 = vmatprep.subr.mxu0 0.0
    %222 = vmatpush1.msra.mxu0 %v206
    %223 = vmatprep.subr.mxu0 0.0
    %224 = vmatpush1.msra.mxu0 %v207
    %225 = vmatprep.subr.mxu0 0.0
    %226 = vmatpush1.msra.mxu0 %v208
    %227 = vmatprep.subr.mxu0 0.0
    %228 = vmatpush1.msra.mxu0 %v209
    %229 = vmatprep.subr.mxu0 0.0
    %230 = vmatpush1.msra.mxu0 %v210
    %231 = vmatprep.subr.mxu0 0.0
    %232 = vmatpush1.msra.mxu0 %v211
    %233 = vmatprep.subr.mxu0 0.0
    %234 = vmatpush1.msra.mxu0 %v212
    %235 = vmatprep.subr.mxu0 0.0
    %236 = vmatpush1.msra.mxu0 %v213
    %237 = vmatprep.subr.mxu0 0.0
    %238 = vmatpush1.msra.mxu0 0.0
    %239 = vmatprep.subr.mxu0 0.0
    %240 = vmatpush1.msra.mxu0 0.0
    %241 = vmatprep.subr.mxu0 0.0
    %242 = vmatpush1.msra.mxu0 0.0
    %243 = vmatprep.subr.mxu0 0.0
    %244 = vmatpush1.msra.mxu0 0.0
    %245 = vmatprep.subr.mxu0 0.0
    %246 = vmatpush1.msra.mxu0 0.0
    %247 = vmatprep.subr.mxu0 0.0
    %248 = vmatpush1.msra.mxu0 0.0
    %249 = vmatprep.subr.mxu0 0.0
    %250 = vmatpush1.msra.mxu0 0.0
    %251 = vmatprep.subr.mxu0 0.0
    %252 = vmatpush1.msra.mxu0 0.0
    %253 = vmatprep.subr.mxu0 0.0
    %254 = vmatpush1.msra.mxu0 0.0
    %255 = vmatprep.subr.mxu0 0.0
    %256 = vmatpush1.msra.mxu0 0.0
    %257 = vmatprep.subr.mxu0 0.0
    %258 = vmatpush1.msra.mxu0 0.0
    %259 = vmatprep.subr.mxu0 0.0
    %260 = vmatpush1.msra.mxu0 0.0
    %261 = vmatprep.subr.mxu0 0.0
    %262 = vmatpush1.msra.mxu0 0.0
    %263 = vmatprep.subr.mxu0 0.0
    %264 = vmatpush1.msra.mxu0 0.0
    %265 = vmatprep.subr.mxu0 0.0
    %266 = vmatpush1.msra.mxu0 0.0
    %267 = vmatprep.subr.mxu0 0.0
    %268 = vmatpush1.msra.mxu0 0.0
    %269 = vmatprep.subr.mxu0 0.0
    %270 = vmatpush1.msra.mxu0 0.0
    %271 = vmatprep.subr.mxu0 0.0
    %272 = vmatpush1.msra.mxu0 0.0
    %273 = vmatprep.subr.mxu0 0.0
    %274 = vmatpush1.msra.mxu0 0.0
    %275 = vmatprep.subr.mxu0 0.0
    %276 = vmatpush1.msra.mxu0 0.0
    %277 = vmatprep.subr.mxu0 0.0
    %278 = vmatpush1.msra.mxu0 0.0
    %279 = vmatprep.subr.mxu0 0.0
    %280 = vmatpush1.msra.mxu0 0.0
    %281 = vmatprep.subr.mxu0 0.0
    %282 = vmatpush1.msra.mxu0 0.0
    %283 = vmatprep.subr.mxu0 0.0
    %284 = vmatpush1.msra.mxu0 0.0
    %285 = vmatprep.mubr.f32.mxu0 0.0
    %286 = vmatmul.mubr.f32.gmra.mrb[0].mxu0 %v219
    %v287 = vpop.f32.mrb[0].mxu0
    %v288 = vadd.f32 %v216, %v287
    %v289 = vpop.f32.mrb[0].mxu0
    %290 = vdwg.mxu0
    %v291 = vmax.f32 %v288, 0.0
    %v292 = vsel %vm204, %v291, %v27
    %v293 = vld [vmem:[%s4] sm:$0xff]
    %v294 = vld [vmem:[%s4 + $0x8] sm:$0xff]
    %v295 = vld [vmem:[%s4 + $0x10] sm:$0xff]
    %v296 = vld [vmem:[%s4 + $0x18] sm:$0xff]
    %v297 = vld [vmem:[%s4 + $0x20] sm:$0xff]
    %v298 = vld [vmem:[%s4 + $0x28] sm:$0xff]
    %v299 = vld [vmem:[%s4 + $0x30] sm:$0xff]
    %v300 = vld [vmem:[%s4 + $0x38] sm:$0xff]
    %v302 = vsel %vm38, %v292, 0
    %304 = vmatprep.subr.mxu0 0.0
    %305 = vmatpush1.msra.mxu0 %v293
    %306 = vmatprep.subr.mxu0 0.0
    %307 = vmatpush1.msra.mxu0 %v294
    %308 = vmatprep.subr.mxu0 0.0
    %309 = vmatpush1.msra.mxu0 %v295
    %310 = vmatprep.subr.mxu0 0.0
    %311 = vmatpush1.msra.mxu0 %v296
    %312 = vmatprep.subr.mxu0 0.0
    %313 = vmatpush1.msra.mxu0 %v297
    %314 = vmatprep.subr.mxu0 0.0
    %315 = vmatpush1.msra.mxu0 %v298
    %316 = vmatprep.subr.mxu0 0.0
    %317 = vmatpush1.msra.mxu0 %v299
    %318 = vmatprep.subr.mxu0 0.0
    %319 = vmatpush1.msra.mxu0 %v300
    %320 = vmatprep.subr.mxu0 0.0
    %321 = vmatpush1.msra.mxu0 0.0
    %322 = vmatprep.subr.mxu0 0.0
    %323 = vmatpush1.msra.mxu0 0.0
    %324 = vmatprep.subr.mxu0 0.0
    %325 = vmatpush1.msra.mxu0 0.0
    %326 = vmatprep.subr.mxu0 0.0
    %327 = vmatpush1.msra.mxu0 0.0
    %328 = vmatprep.subr.mxu0 0.0
    %329 = vmatpush1.msra.mxu0 0.0
    %330 = vmatprep.subr.mxu0 0.0
    %331 = vmatpush1.msra.mxu0 0.0
    %332 = vmatprep.subr.mxu0 0.0
    %333 = vmatpush1.msra.mxu0 0.0
    %334 = vmatprep.subr.mxu0 0.0
    %335 = vmatpush1.msra.mxu0 0.0
    %336 = vmatprep.subr.mxu0 0.0
    %337 = vmatpush1.msra.mxu0 0.0
    %338 = vmatprep.subr.mxu0 0.0
    %339 = vmatpush1.msra.mxu0 0.0
    %340 = vmatprep.subr.mxu0 0.0
    %341 = vmatpush1.msra.mxu0 0.0
    %342 = vmatprep.subr.mxu0 0.0
    %343 = vmatpush1.msra.mxu0 0.0
    %344 = vmatprep.subr.mxu0 0.0
    %345 = vmatpush1.msra.mxu0 0.0
    %346 = vmatprep.subr.mxu0 0.0
    %347 = vmatpush1.msra.mxu0 0.0
    %348 = vmatprep.subr.mxu0 0.0
    %349 = vmatpush1.msra.mxu0 0.0
    %350 = vmatprep.subr.mxu0 0.0
    %351 = vmatpush1.msra.mxu0 0.0
    %352 = vmatprep.subr.mxu0 0.0
    %353 = vmatpush1.msra.mxu0 0.0
    %354 = vmatprep.subr.mxu0 0.0
    %355 = vmatpush1.msra.mxu0 0.0
    %356 = vmatprep.subr.mxu0 0.0
    %357 = vmatpush1.msra.mxu0 0.0
    %358 = vmatprep.subr.mxu0 0.0
    %359 = vmatpush1.msra.mxu0 0.0
    %360 = vmatprep.subr.mxu0 0.0
    %361 = vmatpush1.msra.mxu0 0.0
    %362 = vmatprep.subr.mxu0 0.0
    %363 = vmatpush1.msra.mxu0 0.0
    %364 = vmatprep.subr.mxu0 0.0
    %365 = vmatpush1.msra.mxu0 0.0
    %366 = vmatprep.subr.mxu0 0.0
    %367 = vmatpush1.msra.mxu0 0.0
    %368 = vmatprep.mubr.f32.mxu0 0.0
    %369 = vmatmul.mubr.f32.gmra.mrb[0].mxu0 %v302
    %v370 = vpop.f32.mrb[0].mxu0
    %v371 = vadd.f32 %v28, %v370
    %v372 = vpop.f32.mrb[0].mxu0
    %373 = vdwg.mxu0
    %v374 = vxor.u32 %v371, 2147483648
    %v375 = vmul.f32 %v374, 1.442695
    %v376 = vpow.pop %v375
    %v377 = vadd.f32 %v376, 1.0
    %v378 = vrcp.pop %v377
    %v379 = vmul.f32 1.0, %v378
    %381 = vrot.lane.b32.xlu0 %v371, 32
    %v382 = vpop.permute.xlu0 %381
    %v384 = vmul.f32 %v379, %v382
    %386 = vrot.lane.b32.xlu0 %v384, 64
    %v387 = vpop.permute.xlu0 %386
    %v389 = vadd.f32 %v371, %v387
    %v390 = vtanh.pop %v389
    %v391 = vsub.f32 1.0, %v379
    %393 = vrot.lane.b32.xlu0 %v390, 96
    %v394 = vpop.permute.xlu0 %393
    %v396 = vmul.f32 %v391, %v394
    %v397 = vmul.f32 %v379, %v27
    %v398 = vadd.f32 %v396, %v397
    %v399 = vld [vmem:[%s5] sm:$0xff]
    %v400 = vld [vmem:[%s5 + $0x8] sm:$0xff]
    %v401 = vld [vmem:[%s5 + $0x10] sm:$0xff]
    %v402 = vld [vmem:[%s5 + $0x18] sm:$0xff]
    %404 = vrot.lane.b32.xlu0 %v398, 96
    %v405 = vpop.permute.xlu0 %404
    %406 = vrot.lane.b32.xlu0 %v29, 80
    %v407 = vpop.permute.xlu0 %406
    %v409 = vsel %vm204, %v405, 0
    %411 = vmatprep.subr.mxu0 0.0
    %412 = vmatpush1.msra.mxu0 %v399
    %413 = vmatprep.subr.mxu0 0.0
    %414 = vmatpush1.msra.mxu0 %v400
    %415 = vmatprep.subr.mxu0 0.0
    %416 = vmatpush1.msra.mxu0 %v401
    %417 = vmatprep.subr.mxu0 0.0
    %418 = vmatpush1.msra.mxu0 %v402
    %419 = vmatprep.subr.mxu0 0.0
    %420 = vmatpush1.msra.mxu0 0.0
    %421 = vmatprep.subr.mxu0 0.0
    %422 = vmatpush1.msra.mxu0 0.0
    %423 = vmatprep.subr.mxu0 0.0
    %424 = vmatpush1.msra.mxu0 0.0
    %425 = vmatprep.subr.mxu0 0.0
    %426 = vmatpush1.msra.mxu0 0.0
    %427 = vmatprep.subr.mxu0 0.0
    %428 = vmatpush1.msra.mxu0 0.0
    %429 = vmatprep.subr.mxu0 0.0
    %430 = vmatpush1.msra.mxu0 0.0
    %431 = vmatprep.subr.mxu0 0.0
    %432 = vmatpush1.msra.mxu0 0.0
    %433 = vmatprep.subr.mxu0 0.0
    %434 = vmatpush1.msra.mxu0 0.0
    %435 = vmatprep.subr.mxu0 0.0
    %436 = vmatpush1.msra.mxu0 0.0
    %437 = vmatprep.subr.mxu0 0.0
    %438 = vmatpush1.msra.mxu0 0.0
    %439 = vmatprep.subr.mxu0 0.0
    %440 = vmatpush1.msra.mxu0 0.0
    %441 = vmatprep.subr.mxu0 0.0
    %442 = vmatpush1.msra.mxu0 0.0
    %443 = vmatprep.subr.mxu0 0.0
    %444 = vmatpush1.msra.mxu0 0.0
    %445 = vmatprep.subr.mxu0 0.0
    %446 = vmatpush1.msra.mxu0 0.0
    %447 = vmatprep.subr.mxu0 0.0
    %448 = vmatpush1.msra.mxu0 0.0
    %449 = vmatprep.subr.mxu0 0.0
    %450 = vmatpush1.msra.mxu0 0.0
    %451 = vmatprep.subr.mxu0 0.0
    %452 = vmatpush1.msra.mxu0 0.0
    %453 = vmatprep.subr.mxu0 0.0
    %454 = vmatpush1.msra.mxu0 0.0
    %455 = vmatprep.subr.mxu0 0.0
    %456 = vmatpush1.msra.mxu0 0.0
    %457 = vmatprep.subr.mxu0 0.0
    %458 = vmatpush1.msra.mxu0 0.0
    %459 = vmatprep.subr.mxu0 0.0
    %460 = vmatpush1.msra.mxu0 0.0
    %461 = vmatprep.subr.mxu0 0.0
    %462 = vmatpush1.msra.mxu0 0.0
    %463 = vmatprep.subr.mxu0 0.0
    %464 = vmatpush1.msra.mxu0 0.0
    %465 = vmatprep.subr.mxu0 0.0
    %466 = vmatpush1.msra.mxu0 0.0
    %467 = vmatprep.subr.mxu0 0.0
    %468 = vmatpush1.msra.mxu0 0.0
    %469 = vmatprep.subr.mxu0 0.0
    %470 = vmatpush1.msra.mxu0 0.0
    %471 = vmatprep.subr.mxu0 0.0
    %472 = vmatpush1.msra.mxu0 0.0
    %473 = vmatprep.subr.mxu0 0.0
    %474 = vmatpush1.msra.mxu0 0.0
    %475 = vmatprep.mubr.f32.mxu0 0.0
    %476 = vmatmul.mubr.f32.gmra.mrb[0].mxu0 %v409
    %v477 = vpop.f32.mrb[0].mxu0
    %v478 = vadd.f32 %v407, %v477
    %v479 = vpop.f32.mrb[0].mxu0
    %480 = vdwg.mxu0
    %vm481 = vcmask 516096
    %v482 = vsel %vm481, %v478, -inf
    %483 = vmax.xlane.f32.xlu0 %v482
    %v484 = vpop.xlane.xlu0 %483
    %v485 = vsub.f32 %v478, %v484
    %v486 = vmul.f32 %v485, 1.442695
    %v487 = vpow.pop %v486
    %v488 = vsel %vm481, %v487, 0.0
    %489 = vadd.xlane.f32.xlu0 %v488
    %v490 = vpop.xlane.xlu0 %489
    %v491 = vlog2.pop %v490
    %v492 = vmul.f32 %v491, 0.6931472
    %v493 = vadd.f32 %v484, %v492
    %v494 = vsub.f32 %v478, %v493
    %495 = vrot.lane.b32.xlu0 %v398, 32
    %v496 = vpop.permute.xlu0 %495
    %498 = vrot.lane.b32.xlu0 %v123, 96
    %v499 = vpop.permute.xlu0 %498
    %v501 = vsel %vm38, %v494, %v496
    %vm502 = vcmask 785408
    %v503 = vsel %vm502, %v501, %v499
    %vm504 = vcmask 916480
    %v505 = vsel %vm504, %v503, 0.0
    %506 = vst [vmem:[#allocation2] sm:$0x1] %v505
    // Predicated region
    $region30: #{tpu_custom_call.1} parent=1 // pred_check
      _
    $region31: #{tpu_custom_call.1} parent=1 // pred_check_branch
      %508 = sbr.rel (0) target = $region33
    $region32: #{tpu_custom_call.1} parent=1 // pred_region
      %s510 = ssub.s32 16, 16
      %511 = vsyncadd [#allocation3], %s510
      %s513 = sshll.u32 [#allocation2], 4
      %s514 = int_to_ptr.vmem [resolvable:$true] %s513
      %516 = dma.vmem_to_hbm [thread:$0]  %s514, 16, %s7, [#allocation3]
    $region33: #{tpu_custom_call.1} parent=1 // pred_fallthru
      _
    // Predicated region
    $region34: #{tpu_custom_call.1} parent=1 // pred_check
      _
    $region35: #{tpu_custom_call.1} parent=1 // pred_check_branch
      %518 = sbr.rel (0) target = $region37
    $region36: #{tpu_custom_call.1} parent=1 // pred_region
      %519 = dma.done [#allocation3], 16
    $region37: #{tpu_custom_call.1} parent=1 // pred_fallthru
      _
    %520 = vsyncpa [#allocation3], 1

</llo_original>
